<compile_context>
chip_gen: v7x
topology: tpu7x:2x2x1
jax: 0.10.0
libtpu: 0.0.40
codegen_flags: <defaults>
</compile_context>

<pallas_src>
import functools

import jax
import jax.numpy as jnp
from jax.experimental import pallas as pl
from jax.experimental.pallas import tpu as pltpu


def _round_up(x, m):
    return (x + m - 1) // m * m


def _ce_label_smooth_kernel(logits_ref, targets_ref, out_ref, *, epsilon, num_classes, num_rows):
    pid = pl.program_id(0)
    tile_n = logits_ref.shape[0]

    x = logits_ref[...].astype(jnp.float32)            # (tile_n, C), upcast in-kernel
    t = targets_ref[...]                                # (tile_n, 1) int32

    # Row logsumexp: Z_n = m_n + log(sum_c exp(x - m_n)).
    m = jnp.max(x, axis=1, keepdims=True)               # (tile_n, 1)
    z = m + jnp.log(jnp.sum(jnp.exp(x - m), axis=1, keepdims=True))

    # Fused smoothed-target reduction (single weighted class-axis sum):
    #   loss_n = Z_n - sum_c x[n,c] * (eps/C + (1-eps)*[c == t_n])
    col = jax.lax.broadcasted_iota(jnp.int32, x.shape, 1)
    w = (epsilon / num_classes) + (1.0 - epsilon) * (col == t).astype(jnp.float32)
    row_loss = z - jnp.sum(x * w, axis=1, keepdims=True)        # (tile_n, 1)

    # Neutralize garbage rows of the ragged trailing block (no wrapper-side padding).
    row = jax.lax.broadcasted_iota(jnp.int32, (tile_n, 1), 0) + pid * tile_n
    partial = jnp.sum(jnp.where(row < num_rows, row_loss, 0.0))

    # Per-tile partial sum -> element [0,0] of this tile's aligned (8,128) output block.
    r8 = jax.lax.broadcasted_iota(jnp.int32, (8, 128), 0)
    c128 = jax.lax.broadcasted_iota(jnp.int32, (8, 128), 1)
    out_ref[...] = jnp.where((r8 == 0) & (c128 == 0), partial, 0.0)


def cross_entropy_label_smooth(
    logits,
    targets,
    *,
    num_classes,
    epsilon,
    target_block_bytes=8 * 1024 * 1024,
    max_tile_rows=None,
):
    """logits: (N, C) float (any float dtype); targets: (N,) int. Returns scalar f32 loss."""
    n, c = logits.shape
    assert c == num_classes

    itemsize = jnp.dtype(logits.dtype).itemsize
    sublane = max(8, 32 // itemsize)                     # 8 f32, 16 bf16, 32 int8/fp8
    row_bytes = _round_up(c, 128) * itemsize             # lane-padded class width in VMEM

    # Row tile from the byte budget, rounded down to the sublane packing, clamped to N.
    budget_rows = max(sublane, (target_block_bytes // row_bytes) // sublane * sublane)
    tile_n = min(budget_rows, _round_up(n, sublane))
    if max_tile_rows is not None:
        tile_n = min(tile_n, max(sublane, _round_up(int(max_tile_rows), sublane)))
    tile_n = max(sublane, tile_n)

    num_tiles = (n + tile_n - 1) // tile_n               # ragged trailing block allowed

    targets_2d = targets.astype(jnp.int32).reshape(n, 1)

    kernel = functools.partial(
        _ce_label_smooth_kernel,
        epsilon=float(epsilon),
        num_classes=int(num_classes),
        num_rows=int(n),
    )

    logits_index_map = lambda i: (i, 0)
    if tile_n <= 64 and num_tiles >= 8:
        # Huge class counts force tiny row tiles: deepen buffering to hide exposed DMA.
        logits_spec = pl.BlockSpec((tile_n, c), logits_index_map, pipeline_mode=pl.Buffered(3))
    else:
        logits_spec = pl.BlockSpec((tile_n, c), logits_index_map)

    cost = pl.CostEstimate(
        flops=6 * n * c,
        transcendentals=n * c + 2 * n,
        bytes_accessed=n * row_bytes + n * 4 + num_tiles * 8 * 128 * 4,
    )

    partials = pl.pallas_call(
        kernel,
        out_shape=jax.ShapeDtypeStruct((num_tiles * 8, 128), jnp.float32),
        grid=(num_tiles,),
        in_specs=[
            logits_spec,                                   # row tile, full class axis
            pl.BlockSpec((tile_n, 1), lambda i: (i, 0)),   # matching targets column
        ],
        out_specs=pl.BlockSpec((8, 128), lambda i: (i, 0)),  # per-tile partial sum block
        compiler_params=pltpu.CompilerParams(
            dimension_semantics=("parallel",),             # no cross-step carry -> megacore OK
            vmem_limit_bytes=48 * 1024 * 1024,             # <= v7x 64 MiB physical, > v5e default
        ),
        cost_estimate=cost,
    )(logits, targets_2d)

    return jnp.sum(partials) / jnp.float32(n)


def _reference(logits, targets, num_classes, epsilon):
    logits = logits.astype(jnp.float32)
    log_probs = jax.nn.log_softmax(logits, axis=1)
    one_hot = jax.nn.one_hot(targets, num_classes, dtype=jnp.float32)
    smoothed = (1.0 - epsilon) * one_hot + epsilon / num_classes
    return jnp.sum(jnp.mean(-smoothed * log_probs, axis=0))


if __name__ == "__main__":
    num_classes = 100   # CIFAR-100
    epsilon = 0.1
    key = jax.random.PRNGKey(0)

    # Case 1: tiny batch -> single block.
    k1, k2, key = jax.random.split(key, 3)
    logits = jax.random.normal(k1, (8, num_classes), dtype=jnp.float32)
    targets = jax.random.randint(k2, (8,), 0, num_classes, dtype=jnp.int32)
    loss = cross_entropy_label_smooth(logits, targets, num_classes=num_classes, epsilon=epsilon)
    jax.block_until_ready(loss)
    ref = _reference(logits, targets, num_classes, epsilon)
    assert jnp.allclose(loss, ref, atol=1e-4, rtol=1e-4), (loss, ref)

    # Case 2: batch not a multiple of the row tile -> multi-step grid with a ragged
    # trailing block (exercises the no-padding path and the per-tile partial outputs).
    k1, k2, key = jax.random.split(key, 3)
    logits2 = jax.random.normal(k1, (36, num_classes), dtype=jnp.float32)
    targets2 = jax.random.randint(k2, (36,), 0, num_classes, dtype=jnp.int32)
    loss2 = cross_entropy_label_smooth(
        logits2, targets2, num_classes=num_classes, epsilon=epsilon, max_tile_rows=16
    )
    jax.block_until_ready(loss2)
    ref2 = _reference(logits2, targets2, num_classes, epsilon)
    assert jnp.allclose(loss2, ref2, atol=1e-4, rtol=1e-4), (loss2, ref2)

    # Case 3: bf16 logits (exercises in-kernel upcast and 16-row sublane packing).
    k1, k2, key = jax.random.split(key, 3)
    logits3 = jax.random.normal(k1, (36, num_classes), dtype=jnp.float32).astype(jnp.bfloat16)
    targets3 = jax.random.randint(k2, (36,), 0, num_classes, dtype=jnp.int32)
    loss3 = cross_entropy_label_smooth(
        logits3, targets3, num_classes=num_classes, epsilon=epsilon, max_tile_rows=16
    )
    jax.block_until_ready(loss3)
    ref3 = _reference(logits3, targets3, num_classes, epsilon)
    assert jnp.allclose(loss3, ref3, atol=2e-3, rtol=2e-3), (loss3, ref3)

    print("KERNEL_OK")
</pallas_src>

<mosaic_0001>
module attributes {stable_mosaic.version = 11 : i64} {
  func.func @_ce_label_smooth_kernel(%arg0: i32, %arg1: memref<8x100xf32, #tpu.memory_space<vmem>>, %arg2: memref<8x1xi32, #tpu.memory_space<vmem>>, %arg3: memref<8x128xf32, #tpu.memory_space<vmem>>) attributes {dimension_semantics = [#tpu.dimension_semantics<parallel>], iteration_bounds = array<i64: 1>, scalar_prefetch = 0 : i64, scratch_operands = 0 : i64, tpu.core_type = #tpu.core_type<tc>, window_params = [{transform_indices = @transform_0, window_bounds = array<i64: 8, 100>}, {transform_indices = @transform_1, window_bounds = array<i64: 8, 1>}, {transform_indices = @transform_2, window_bounds = array<i64: 8, 128>}]} {
    %c0 = arith.constant 0 : index
    %c0_0 = arith.constant 0 : index
    %0 = vector.load %arg1[%c0, %c0_0] : memref<8x100xf32, #tpu.memory_space<vmem>>, vector<8x100xf32>
    %c0_1 = arith.constant 0 : index
    %c0_2 = arith.constant 0 : index
    %1 = vector.load %arg2[%c0_1, %c0_2] : memref<8x1xi32, #tpu.memory_space<vmem>>, vector<8x1xi32>
    %cst = arith.constant dense<0xFF800000> : vector<8xf32>
    %2 = vector.multi_reduction <maximumf>, %0, %cst [1] : vector<8x100xf32> to vector<8xf32>
    %3 = vector.shape_cast %2 : vector<8xf32> to vector<8x1xf32>
    %4 = vector.broadcast %3 : vector<8x1xf32> to vector<8x100xf32>
    %5 = arith.subf %0, %4 : vector<8x100xf32>
    %6 = math.exp %5 : vector<8x100xf32>
    %cst_3 = arith.constant dense<0.000000e+00> : vector<8xf32>
    %7 = vector.multi_reduction <add>, %6, %cst_3 [1] : vector<8x100xf32> to vector<8xf32>
    %8 = vector.shape_cast %7 : vector<8xf32> to vector<8x1xf32>
    %9 = math.log %8 : vector<8x1xf32>
    %10 = arith.addf %3, %9 : vector<8x1xf32>
    %11 = tpu.iota {dimensions = array<i32: 1>} : vector<8x100xi32>
    %12 = vector.broadcast %1 : vector<8x1xi32> to vector<8x100xi32>
    %13 = arith.cmpi eq, %11, %12 : vector<8x100xi32>
    %14 = arith.extui %13 : vector<8x100xi1> to vector<8x100xi32>
    %15 = arith.sitofp %14 : vector<8x100xi32> to vector<8x100xf32>
    %cst_4 = arith.constant 0.899999976 : f32
    %16 = vector.broadcast %cst_4 : f32 to vector<8x100xf32>
    %17 = arith.mulf %16, %15 : vector<8x100xf32>
    %cst_5 = arith.constant 1.000000e-03 : f32
    %18 = vector.broadcast %cst_5 : f32 to vector<8x100xf32>
    %19 = arith.addf %18, %17 : vector<8x100xf32>
    %20 = arith.mulf %0, %19 : vector<8x100xf32>
    %cst_6 = arith.constant dense<0.000000e+00> : vector<8xf32>
    %21 = vector.multi_reduction <add>, %20, %cst_6 [1] : vector<8x100xf32> to vector<8xf32>
    %22 = vector.shape_cast %21 : vector<8xf32> to vector<8x1xf32>
    %23 = arith.subf %10, %22 : vector<8x1xf32>
    %24 = tpu.iota {dimensions = array<i32: 0>} : vector<8x1xi32>
    %c8_i32 = arith.constant 8 : i32
    %25 = arith.muli %arg0, %c8_i32 : i32
    %26 = vector.broadcast %25 : i32 to vector<8x1xi32>
    %27 = arith.addi %24, %26 : vector<8x1xi32>
    %c8_i32_7 = arith.constant 8 : i32
    %28 = vector.broadcast %c8_i32_7 : i32 to vector<8x1xi32>
    %29 = arith.cmpi slt, %27, %28 : vector<8x1xi32>
    %cst_8 = arith.constant 0.000000e+00 : f32
    %30 = vector.broadcast %cst_8 : f32 to vector<8x1xf32>
    %31 = arith.select %29, %23, %30 : vector<8x1xi1>, vector<8x1xf32>
    %32 = vector.shape_cast %31 : vector<8x1xf32> to vector<1x8x1xf32>
    %cst_9 = arith.constant dense<0.000000e+00> : vector<1xf32>
    %33 = vector.multi_reduction <add>, %32, %cst_9 [1, 2] : vector<1x8x1xf32> to vector<1xf32>
    %34 = vector.shape_cast %33 : vector<1xf32> to vector<1x1x1xf32>
    %35 = vector.extract %34[0, 0, 0] : f32 from vector<1x1x1xf32>
    %36 = tpu.iota {dimensions = array<i32: 0>} : vector<8x128xi32>
    %37 = tpu.iota {dimensions = array<i32: 1>} : vector<8x128xi32>
    %c0_i32 = arith.constant 0 : i32
    %38 = vector.broadcast %c0_i32 : i32 to vector<8x128xi32>
    %39 = arith.cmpi eq, %36, %38 : vector<8x128xi32>
    %c0_i32_10 = arith.constant 0 : i32
    %40 = vector.broadcast %c0_i32_10 : i32 to vector<8x128xi32>
    %41 = arith.cmpi eq, %37, %40 : vector<8x128xi32>
    %42 = arith.andi %39, %41 : vector<8x128xi1>
    %cst_11 = arith.constant 0.000000e+00 : f32
    %43 = vector.broadcast %35 : f32 to vector<8x128xf32>
    %44 = vector.broadcast %cst_11 : f32 to vector<8x128xf32>
    %45 = arith.select %42, %43, %44 : vector<8x128xi1>, vector<8x128xf32>
    %c0_12 = arith.constant 0 : index
    %c0_13 = arith.constant 0 : index
    %46 = vector.load %arg3[%c0_12, %c0_13] : memref<8x128xf32, #tpu.memory_space<vmem>>, vector<8x128xf32>
    tpu.vector_store %arg3[%c0_12, %c0_13], %45 {strides = array<i32>} : memref<8x128xf32, #tpu.memory_space<vmem>>, vector<8x128xf32>,
    return
  }
  func.func @transform_0(%arg0: i32) -> (i32, i32) {
    %c0_i32 = arith.constant 0 : i32
    %c0_i32_0 = arith.constant 0 : i32
    return %arg0, %c0_i32 : i32, i32
  }
  func.func @transform_1(%arg0: i32) -> (i32, i32) {
    %c0_i32 = arith.constant 0 : i32
    %c0_i32_0 = arith.constant 0 : i32
    return %arg0, %c0_i32 : i32, i32
  }
  func.func @transform_2(%arg0: i32) -> (i32, i32) {
    %c0_i32 = arith.constant 0 : i32
    %c0_i32_0 = arith.constant 0 : i32
    return %arg0, %c0_i32 : i32, i32
  }
}

</mosaic_0001>

<llo_original>
// kernel: tpu_custom_call.1
$region0: #{tpu_custom_call.1}
  #allocation0 [shape = 'u32[]', space=smem, size = 0x4, offset = 0x4, fixed_abs, tag = 'smem constant byte address 0x4 - core index']
  #allocation1 [shape = 'u32[144,128]{1,0:T(1,128)}', space=vmem, size = 0x12000, scoped, tag = 'internal scratch']
  %s0 = inlined_call_operand.vmem [shape: f32[8,100], index: 0, kind: input, shape index: {}]
  %s1 = inlined_call_operand.vmem [shape: s32[8,1], index: 1, kind: input, shape index: {}]
  %s2 = inlined_call_operand.hbm [shape: f32[8,128], index: 2, kind: output, shape index: {}]
  %s3 = sld [smem:[#allocation0]]
  $region18: #{tpu_custom_call.1} parent=0
    _
  %s5 = ssub.s32 1, %s3
  %s6 = scalar_select 0, %s5, %s3
  $region1: #{tpu_custom_call.1} parent=0
    #allocation2 [shape = 'u8[4096]{0}', space=vmem, size = 0x1000, scoped, tag = 'output window, operand 0, single buffered']
    #allocation3 [shape = 's32[1]{0}', space=sflag, size = 0x4, scoped, tag = 'scoped memory for tpu_custom_call.1']
    %7 = vsyncpa [#allocation3], 0
    // Predicated region
    $region2: #{tpu_custom_call.1} parent=1 // pred_check
      _
    $region3: #{tpu_custom_call.1} parent=1 // pred_check_branch
      %9 = sbr.rel (0) target = $region5
    $region4: #{tpu_custom_call.1} parent=1 // pred_region
      _
    $region5: #{tpu_custom_call.1} parent=1 // pred_fallthru
      _
    // Predicated region
    $region6: #{tpu_custom_call.1} parent=1 // pred_check
      _
    $region7: #{tpu_custom_call.1} parent=1 // pred_check_branch
      %11 = sbr.rel (0) target = $region9
    $region8: #{tpu_custom_call.1} parent=1 // pred_region
      _
    $region9: #{tpu_custom_call.1} parent=1 // pred_fallthru
      _
    %v12 = vld [vmem:[%s0] sm:$0xff]
    %v13 = vld [vmem:[%s1] sm:$0xff]
    %vm14 = vcmask 818176
    %v15 = vsel %vm14, %v12, -inf
    %16 = vmax.xlane.f32.xlu0 %v15
    %v17 = vpop.xlane.xlu0 %16
    %v18 = vsub.f32 %v12, %v17
    %v19 = vmul.f32 %v18, 1.442695
    %v20 = vpow.pop %v19
    %v21 = vsel %vm14, %v20, 0.0
    %22 = vadd.xlane.f32.xlu0 %v21
    %v23 = vpop.xlane.xlu0 %22
    %v24 = vlog2.pop %v23
    %v25 = vmul.f32 %v24, 0.6931472
    %v26 = vadd.f32 %v17, %v25
    %v27 = vlaneseq
    %v28 = vand.u32 %v27, 127
    %29 = vset.pattern.permute.xlu0 0
    %30 = vperm.xlu0 %29, %v13
    %v31 = vpop.permute.xlu0 %30
    %vm32 = vcmp.eq.s32.totalorder %v28, %v31
    %v33 = vsel %vm32, 1, 0
    %v34 = vcvt.s32.f32 %v33
    %v35 = vmul.f32 %v34, 0.9
    %v36 = vadd.f32 %v35, 0.001
    %v37 = vmul.f32 %v12, %v36
    %v38 = vsel %vm14, %v37, 0.0
    %39 = vadd.xlane.f32.xlu0 %v38
    %v40 = vpop.xlane.xlu0 %39
    %v41 = vsub.f32 %v26, %v40
    %v42 = vlaneseq
    %v43 = vshrl.u32 %v42, 7
    %s44 = smul.u32 0, 8
    %v45 = vstv %s44
    %v46 = vadd.s32 %v43, %v45
    %vm47 = vcmp.lt.s32.totalorder %v46, 8
    %v48 = vsel %vm47, %v41, 0.0
    %vm49 = vcmask 7168
    %v50 = vsel %vm49, %v48, 0.0
    %51 = vadd.xlane.f32.xlu0 %v50
    %v52 = vpop.xlane.xlu0 %51
    %v53 = vrot.slane %v52, 4
    %v54 = vadd.f32 %v52, %v53
    %v55 = vrot.slane %v54, 2
    %v56 = vadd.f32 %v54, %v55
    %v57 = vrot.slane %v56, 1
    %v58 = vadd.f32 %v56, %v57
    %s59 = vtos %v58
    %vm60 = vcmp.eq.s32.totalorder %v43, 0
    %vm61 = vcmp.eq.s32.totalorder %v28, 0
    %vm62 = vmand %vm60, %vm61
    %v63 = vstv %s59
    %v64 = vsel %vm62, %v63, 0.0
    %65 = vst [vmem:[#allocation2] sm:$0xff] %v64
    // Predicated region
    $region10: #{tpu_custom_call.1} parent=1 // pred_check
      _
    $region11: #{tpu_custom_call.1} parent=1 // pred_check_branch
      %67 = sbr.rel (0) target = $region13
    $region12: #{tpu_custom_call.1} parent=1 // pred_region
      %s69 = ssub.s32 128, 128
      %70 = vsyncadd [#allocation3], %s69
      %s72 = sshll.u32 [#allocation2], 4
      %s73 = int_to_ptr.vmem [resolvable:$true] %s72
      %75 = dma.vmem_to_hbm [thread:$0]  %s73, 128, %s2, [#allocation3]
    $region13: #{tpu_custom_call.1} parent=1 // pred_fallthru
      _
    // Predicated region
    $region14: #{tpu_custom_call.1} parent=1 // pred_check
      _
    $region15: #{tpu_custom_call.1} parent=1 // pred_check_branch
      %77 = sbr.rel (0) target = $region17
    $region16: #{tpu_custom_call.1} parent=1 // pred_region
      %78 = dma.done [#allocation3], 128
    $region17: #{tpu_custom_call.1} parent=1 // pred_fallthru
      _
    %79 = vsyncpa [#allocation3], 1

</llo_original>
